<compile_context>
chip_gen: v5e
topology: v5e:2x2
jax: 0.10.0
libtpu: 0.0.40
codegen_flags: <defaults>
</compile_context>

<pallas_src>
import jax
import jax.numpy as jnp
from jax.experimental import pallas as pl
from jax.experimental.pallas import tpu as pltpu


def irisnet_kernel(x_ref, w1_ref, b1_ref, w2_ref, b2_ref, w3_ref, b3_ref, o_ref):
    # x_ref: (in_f, tb)  — batch on the lane axis.
    x = x_ref[...]
    # fc1 + relu1: (h1, in_f) @ (in_f, tb) -> (h1, tb); bias (h1, 1) broadcasts
    # over the lane (batch) axis.
    h1 = jnp.dot(w1_ref[...], x, preferred_element_type=jnp.float32)
    h1 = jnp.maximum(h1 + b1_ref[...], 0.0)
    # fc2 + relu2
    h2 = jnp.dot(w2_ref[...], h1, preferred_element_type=jnp.float32)
    h2 = jnp.maximum(h2 + b2_ref[...], 0.0)
    # fc3 (no activation)
    out = jnp.dot(w3_ref[...], h2, preferred_element_type=jnp.float32)
    o_ref[...] = (out + b3_ref[...]).astype(o_ref.dtype)
    # TODO(synk): once step overhead is measured away, fc1 (K=4) / fc3 (N=3)
    # could become unrolled VPU broadcast-FMAs to skip two dependent MXU trips.


def irisnet_forward(x, params, *, block_batch=4096, single_step_max=4096):
    """x: (B, input_size) f32; params: w1,b1,w2,b2,w3,b3 in PyTorch (out,in)/(out,1) layout."""
    w1, b1, w2, b2, w3, b3 = (params[k] for k in ("w1", "b1", "w2", "b2", "w3", "b3"))
    B, in_f = x.shape
    num_classes = w3.shape[0]

    # Layout plumbing: batch onto the lane axis.
    x_t = x.T  # (in_f, B)

    if B <= single_step_max:
        # Single grid step: block == full array, so arbitrary B is legal
        # (no 128-multiple requirement, no padding, no extra HBM pass).
        tb = B
        b_pad = B
        grid = (1,)
        dim_sems = ("arbitrary",)
    else:
        # Large-batch streaming path: lane tile must be a multiple of 128.
        tb = max(128, (min(block_batch, B) // 128) * 128)
        b_pad = pl.cdiv(B, tb) * tb
        if b_pad != B:
            x_t = jnp.pad(x_t, ((0, 0), (0, b_pad - B)))
        grid = (b_pad // tb,)
        # Independent batch tiles -> shard across v7x's 2 TensorCores.
        dim_sems = ("parallel",)

    batch_map = lambda i: (0, i)   # x^T / out^T: stream over batch tiles (lane axis)
    const_map = lambda i: (0, 0)   # weights/biases: fetched once, VMEM-resident

    out_t = pl.pallas_call(
        irisnet_kernel,
        out_shape=jax.ShapeDtypeStruct((num_classes, b_pad), jnp.float32),
        grid=grid,
        in_specs=[
            pl.BlockSpec((in_f, tb), batch_map),
            pl.BlockSpec(w1.shape, const_map),
            pl.BlockSpec(b1.shape, const_map),
            pl.BlockSpec(w2.shape, const_map),
            pl.BlockSpec(b2.shape, const_map),
            pl.BlockSpec(w3.shape, const_map),
            pl.BlockSpec(b3.shape, const_map),
        ],
        out_specs=pl.BlockSpec((num_classes, tb), batch_map),
        compiler_params=pltpu.CompilerParams(
            dimension_semantics=dim_sems,
        ),
    )(x_t, w1, b1, w2, b2, w3, b3)

    out = out_t[:, :B].T if b_pad != B else out_t.T
    return out


def init_params(key, input_size, hidden1_size, hidden2_size, num_classes):
    """Deterministic init mimicking PyTorch nn.Linear (U(-1/sqrt(fan_in), +)),
    kept in PyTorch-native (out_features, in_features) / (out_features, 1) layout."""
    ks = jax.random.split(key, 6)

    def linear(kw, kb, fan_in, fan_out):
        bound = 1.0 / jnp.sqrt(float(fan_in))
        w = jax.random.uniform(kw, (fan_out, fan_in), jnp.float32, -bound, bound)
        b = jax.random.uniform(kb, (fan_out, 1), jnp.float32, -bound, bound)
        return w, b

    w1, b1 = linear(ks[0], ks[1], input_size, hidden1_size)
    w2, b2 = linear(ks[2], ks[3], hidden1_size, hidden2_size)
    w3, b3 = linear(ks[4], ks[5], hidden2_size, num_classes)
    return dict(w1=w1, b1=b1, w2=w2, b2=b2, w3=w3, b3=b3)


def irisnet_reference(x, p):
    h1 = jnp.maximum(x @ p["w1"].T + p["b1"].T, 0.0)
    h2 = jnp.maximum(h1 @ p["w2"].T + p["b2"].T, 0.0)
    return h2 @ p["w3"].T + p["b3"].T


if __name__ == "__main__":
    # Iris-like dims: 4 input features, two small hidden layers, 3 classes.
    batch, input_size, hidden1, hidden2, num_classes = 200, 4, 32, 32, 3

    key = jax.random.PRNGKey(0)
    k_params, k_x = jax.random.split(key)
    params = init_params(k_params, input_size, hidden1, hidden2, num_classes)
    x = jax.random.normal(k_x, (batch, input_size), jnp.float32)

    ref = irisnet_reference(x, params)

    # Fast path: small batch -> single grid step, no padding.
    out = irisnet_forward(x, params)
    out = jax.block_until_ready(out)
    assert out.shape == (batch, num_classes)
    assert jnp.allclose(out, ref, atol=1e-5, rtol=1e-5)

    # Also exercise the large-batch streaming path (tb=128, padded, grid=(2,)).
    out_tiled = irisnet_forward(x, params, block_batch=128, single_step_max=0)
    out_tiled = jax.block_until_ready(out_tiled)
    assert out_tiled.shape == (batch, num_classes)
    assert jnp.allclose(out_tiled, ref, atol=1e-5, rtol=1e-5)

    print("KERNEL_OK")
</pallas_src>

<mosaic_0001>
module attributes {stable_mosaic.version = 11 : i64} {
  func.func @irisnet_kernel(%arg0: i32, %arg1: memref<4x200xf32, #tpu.memory_space<vmem>>, %arg2: memref<32x4xf32, #tpu.memory_space<vmem>>, %arg3: memref<32x1xf32, #tpu.memory_space<vmem>>, %arg4: memref<32x32xf32, #tpu.memory_space<vmem>>, %arg5: memref<32x1xf32, #tpu.memory_space<vmem>>, %arg6: memref<3x32xf32, #tpu.memory_space<vmem>>, %arg7: memref<3x1xf32, #tpu.memory_space<vmem>>, %arg8: memref<3x200xf32, #tpu.memory_space<vmem>>) attributes {dimension_semantics = [#tpu.dimension_semantics<arbitrary>], iteration_bounds = array<i64: 1>, scalar_prefetch = 0 : i64, scratch_operands = 0 : i64, tpu.core_type = #tpu.core_type<tc>, window_params = [{transform_indices = @transform_0, window_bounds = array<i64: 4, 200>}, {pipeline_mode = #tpu.pipeline_mode<synchronous>, transform_indices = @transform_1, window_bounds = array<i64: 32, 4>}, {pipeline_mode = #tpu.pipeline_mode<synchronous>, transform_indices = @transform_2, window_bounds = array<i64: 32, 1>}, {pipeline_mode = #tpu.pipeline_mode<synchronous>, transform_indices = @transform_3, window_bounds = array<i64: 32, 32>}, {pipeline_mode = #tpu.pipeline_mode<synchronous>, transform_indices = @transform_4, window_bounds = array<i64: 32, 1>}, {pipeline_mode = #tpu.pipeline_mode<synchronous>, transform_indices = @transform_5, window_bounds = array<i64: 3, 32>}, {pipeline_mode = #tpu.pipeline_mode<synchronous>, transform_indices = @transform_6, window_bounds = array<i64: 3, 1>}, {transform_indices = @transform_7, window_bounds = array<i64: 3, 200>}]} {
    %c0 = arith.constant 0 : index
    %c0_0 = arith.constant 0 : index
    %0 = vector.load %arg1[%c0, %c0_0] : memref<4x200xf32, #tpu.memory_space<vmem>>, vector<4x200xf32>
    %c0_1 = arith.constant 0 : index
    %c0_2 = arith.constant 0 : index
    %1 = vector.load %arg2[%c0_1, %c0_2] : memref<32x4xf32, #tpu.memory_space<vmem>>, vector<32x4xf32>
    %cst = arith.constant dense<0.000000e+00> : vector<32x200xf32>
    %2 = tpu.matmul %1, %0, %cst {dimension_numbers = #tpu.dot_dimension_numbers<[1], [0], [0], [1], [0, 0, 1, 1], [], []>} : vector<32x4xf32>, vector<4x200xf32>, vector<32x200xf32> -> vector<32x200xf32>
    %c0_3 = arith.constant 0 : index
    %c0_4 = arith.constant 0 : index
    %3 = vector.load %arg3[%c0_3, %c0_4] : memref<32x1xf32, #tpu.memory_space<vmem>>, vector<32x1xf32>
    %4 = vector.broadcast %3 : vector<32x1xf32> to vector<32x200xf32>
    %5 = arith.addf %2, %4 : vector<32x200xf32>
    %cst_5 = arith.constant 0.000000e+00 : f32
    %6 = vector.broadcast %cst_5 : f32 to vector<32x200xf32>
    %7 = arith.maximumf %5, %6 : vector<32x200xf32>
    %c0_6 = arith.constant 0 : index
    %c0_7 = arith.constant 0 : index
    %8 = vector.load %arg4[%c0_6, %c0_7] : memref<32x32xf32, #tpu.memory_space<vmem>>, vector<32x32xf32>
    %cst_8 = arith.constant dense<0.000000e+00> : vector<32x200xf32>
    %9 = tpu.matmul %8, %7, %cst_8 {dimension_numbers = #tpu.dot_dimension_numbers<[1], [0], [0], [1], [0, 0, 1, 1], [], []>} : vector<32x32xf32>, vector<32x200xf32>, vector<32x200xf32> -> vector<32x200xf32>
    %c0_9 = arith.constant 0 : index
    %c0_10 = arith.constant 0 : index
    %10 = vector.load %arg5[%c0_9, %c0_10] : memref<32x1xf32, #tpu.memory_space<vmem>>, vector<32x1xf32>
    %11 = vector.broadcast %10 : vector<32x1xf32> to vector<32x200xf32>
    %12 = arith.addf %9, %11 : vector<32x200xf32>
    %cst_11 = arith.constant 0.000000e+00 : f32
    %13 = vector.broadcast %cst_11 : f32 to vector<32x200xf32>
    %14 = arith.maximumf %12, %13 : vector<32x200xf32>
    %c0_12 = arith.constant 0 : index
    %c0_13 = arith.constant 0 : index
    %15 = vector.load %arg6[%c0_12, %c0_13] : memref<3x32xf32, #tpu.memory_space<vmem>>, vector<3x32xf32>
    %cst_14 = arith.constant dense<0.000000e+00> : vector<3x200xf32>
    %16 = tpu.matmul %15, %14, %cst_14 {dimension_numbers = #tpu.dot_dimension_numbers<[1], [0], [0], [1], [0, 0, 1, 1], [], []>} : vector<3x32xf32>, vector<32x200xf32>, vector<3x200xf32> -> vector<3x200xf32>
    %c0_15 = arith.constant 0 : index
    %c0_16 = arith.constant 0 : index
    %17 = vector.load %arg7[%c0_15, %c0_16] : memref<3x1xf32, #tpu.memory_space<vmem>>, vector<3x1xf32>
    %18 = vector.broadcast %17 : vector<3x1xf32> to vector<3x200xf32>
    %19 = arith.addf %16, %18 : vector<3x200xf32>
    %c0_17 = arith.constant 0 : index
    %c0_18 = arith.constant 0 : index
    %20 = vector.load %arg8[%c0_17, %c0_18] : memref<3x200xf32, #tpu.memory_space<vmem>>, vector<3x200xf32>
    tpu.vector_store %arg8[%c0_17, %c0_18], %19 {strides = array<i32>} : memref<3x200xf32, #tpu.memory_space<vmem>>, vector<3x200xf32>,
    return
  }
  func.func @transform_0(%arg0: i32) -> (i32, i32) {
    %c0_i32 = arith.constant 0 : i32
    %c0_i32_0 = arith.constant 0 : i32
    return %c0_i32, %arg0 : i32, i32
  }
  func.func @transform_1(%arg0: i32) -> (i32, i32) {
    %c0_i32 = arith.constant 0 : i32
    %c0_i32_0 = arith.constant 0 : i32
    %c0_i32_1 = arith.constant 0 : i32
    return %c0_i32, %c0_i32_0 : i32, i32
  }
  func.func @transform_2(%arg0: i32) -> (i32, i32) {
    %c0_i32 = arith.constant 0 : i32
    %c0_i32_0 = arith.constant 0 : i32
    %c0_i32_1 = arith.constant 0 : i32
    return %c0_i32, %c0_i32_0 : i32, i32
  }
  func.func @transform_3(%arg0: i32) -> (i32, i32) {
    %c0_i32 = arith.constant 0 : i32
    %c0_i32_0 = arith.constant 0 : i32
    %c0_i32_1 = arith.constant 0 : i32
    return %c0_i32, %c0_i32_0 : i32, i32
  }
  func.func @transform_4(%arg0: i32) -> (i32, i32) {
    %c0_i32 = arith.constant 0 : i32
    %c0_i32_0 = arith.constant 0 : i32
    %c0_i32_1 = arith.constant 0 : i32
    return %c0_i32, %c0_i32_0 : i32, i32
  }
  func.func @transform_5(%arg0: i32) -> (i32, i32) {
    %c0_i32 = arith.constant 0 : i32
    %c0_i32_0 = arith.constant 0 : i32
    %c0_i32_1 = arith.constant 0 : i32
    return %c0_i32, %c0_i32_0 : i32, i32
  }
  func.func @transform_6(%arg0: i32) -> (i32, i32) {
    %c0_i32 = arith.constant 0 : i32
    %c0_i32_0 = arith.constant 0 : i32
    %c0_i32_1 = arith.constant 0 : i32
    return %c0_i32, %c0_i32_0 : i32, i32
  }
  func.func @transform_7(%arg0: i32) -> (i32, i32) {
    %c0_i32 = arith.constant 0 : i32
    %c0_i32_0 = arith.constant 0 : i32
    return %c0_i32, %arg0 : i32, i32
  }
}

</mosaic_0001>

<llo_original>
// kernel: tpu_custom_call.1
$region0: #{tpu_custom_call.1}
  #allocation0 [shape = 'u32[]', space=smem, size = 0x4, offset = 0x4, fixed_abs, tag = 'smem constant byte address 0x4 - core index']
  #allocation1 [shape = 'u32[72,128]{1,0:T(1,128)}', space=vmem, size = 0x9000, scoped, tag = 'internal scratch']
  %s0 = inlined_call_operand.vmem [shape: f32[4,200], index: 0, kind: input, shape index: {}]
  %s1 = inlined_call_operand.vmem [shape: f32[32,4], index: 1, kind: input, shape index: {}]
  %s2 = inlined_call_operand.vmem [shape: f32[32,1], index: 2, kind: input, shape index: {}]
  %s3 = inlined_call_operand.vmem [shape: f32[32,32], index: 3, kind: input, shape index: {}]
  %s4 = inlined_call_operand.vmem [shape: f32[32,1], index: 4, kind: input, shape index: {}]
  %s5 = inlined_call_operand.vmem [shape: f32[3,32], index: 5, kind: input, shape index: {}]
  %s6 = inlined_call_operand.vmem [shape: f32[3,1], index: 6, kind: input, shape index: {}]
  %s7 = inlined_call_operand.hbm [shape: f32[3,200], index: 7, kind: output, shape index: {}]
  %s8 = sld [smem:[#allocation0]]
  $region38: #{tpu_custom_call.1} parent=0
    _
  %s10 = ssub.s32 1, %s8
  %s11 = scalar_select 0, %s10, %s8
  $region1: #{tpu_custom_call.1} parent=0
    #allocation2 [shape = 'u8[4096]{0}', space=vmem, size = 0x1000, scoped, tag = 'output window, operand 0, single buffered']
    #allocation3 [shape = 's32[1]{0}', space=sflag, size = 0x4, scoped, tag = 'scoped memory for tpu_custom_call.1']
    %12 = vsyncpa [#allocation3], 0
    // Predicated region
    $region2: #{tpu_custom_call.1} parent=1 // pred_check
      _
    $region3: #{tpu_custom_call.1} parent=1 // pred_check_branch
      %14 = sbr.rel (0) target = $region5
    $region4: #{tpu_custom_call.1} parent=1 // pred_region
      _
    $region5: #{tpu_custom_call.1} parent=1 // pred_fallthru
      _
    // Predicated region
    $region6: #{tpu_custom_call.1} parent=1 // pred_check
      _
    $region7: #{tpu_custom_call.1} parent=1 // pred_check_branch
      %16 = sbr.rel (0) target = $region9
    $region8: #{tpu_custom_call.1} parent=1 // pred_region
      _
    $region9: #{tpu_custom_call.1} parent=1 // pred_fallthru
      _
    // Predicated region
    $region10: #{tpu_custom_call.1} parent=1 // pred_check
      _
    $region11: #{tpu_custom_call.1} parent=1 // pred_check_branch
      %18 = sbr.rel (0) target = $region13
    $region12: #{tpu_custom_call.1} parent=1 // pred_region
      _
    $region13: #{tpu_custom_call.1} parent=1 // pred_fallthru
      _
    // Predicated region
    $region14: #{tpu_custom_call.1} parent=1 // pred_check
      _
    $region15: #{tpu_custom_call.1} parent=1 // pred_check_branch
      %20 = sbr.rel (0) target = $region17
    $region16: #{tpu_custom_call.1} parent=1 // pred_region
      _
    $region17: #{tpu_custom_call.1} parent=1 // pred_fallthru
      _
    // Predicated region
    $region18: #{tpu_custom_call.1} parent=1 // pred_check
      _
    $region19: #{tpu_custom_call.1} parent=1 // pred_check_branch
      %22 = sbr.rel (0) target = $region21
    $region20: #{tpu_custom_call.1} parent=1 // pred_region
      _
    $region21: #{tpu_custom_call.1} parent=1 // pred_fallthru
      _
    // Predicated region
    $region22: #{tpu_custom_call.1} parent=1 // pred_check
      _
    $region23: #{tpu_custom_call.1} parent=1 // pred_check_branch
      %24 = sbr.rel (0) target = $region25
    $region24: #{tpu_custom_call.1} parent=1 // pred_region
      _
    $region25: #{tpu_custom_call.1} parent=1 // pred_fallthru
      _
    // Predicated region
    $region26: #{tpu_custom_call.1} parent=1 // pred_check
      _
    $region27: #{tpu_custom_call.1} parent=1 // pred_check_branch
      %26 = sbr.rel (0) target = $region29
    $region28: #{tpu_custom_call.1} parent=1 // pred_region
      _
    $region29: #{tpu_custom_call.1} parent=1 // pred_fallthru
      _
    %v27 = vld [vmem:[%s0] sm:$0xff]
    %v28 = vld [vmem:[%s1] sm:$0xff]
    %v29 = vld [vmem:[%s1 + $0x8] sm:$0xff]
    %v30 = vld [vmem:[%s1 + $0x10] sm:$0xff]
    %v31 = vld [vmem:[%s1 + $0x18] sm:$0xff]
    %v32 = vld [vmem:[%s2] sm:$0xff]
    %v33 = vld [vmem:[%s2 + $0x8] sm:$0xff]
    %v34 = vld [vmem:[%s2 + $0x10] sm:$0xff]
    %v35 = vld [vmem:[%s2 + $0x18] sm:$0xff]
    %37 = vset.pattern.permute.xlu0 0
    %38 = vperm.xlu0 %37, %v32
    %v39 = vpop.permute.xlu0 %38
    %42 = vset.pattern.permute.xlu0 0
    %43 = vperm.xlu0 %42, %v33
    %v44 = vpop.permute.xlu0 %43
    %47 = vset.pattern.permute.xlu0 0
    %48 = vperm.xlu0 %47, %v34
    %v49 = vpop.permute.xlu0 %48
    %52 = vset.pattern.permute.xlu0 0
    %53 = vperm.xlu0 %52, %v35
    %v54 = vpop.permute.xlu0 %53
    %57 = vst [vmem:[#allocation1] ss:$2 sm:$0xff] %v27
    %v58 = vld.sshfl [vmem:[#allocation1] sm:$0xff pattern:$0x75316420]
    %v59 = vld.sshfl [vmem:[#allocation1 + $0x8] sm:$0xff pattern:$0x75316420]
    %vm60 = vcmask 31744
    %v62 = vsel %vm60, %v28, 0
    %v65 = vsel %vm60, %v29, 0
    %v68 = vsel %vm60, %v30, 0
    %v71 = vsel %vm60, %v31, 0
    %vm73 = vcmask 1043456
    %v74 = vsel %vm73, %v58, 0
    %v76 = vsel %vm73, %v59, 0
    %78 = vmatpush.msra.mxu0 0.0
    %79 = vmatpush.msra.mxu0 0.0
    %80 = vmatpush.msra.mxu0 0.0
    %81 = vmatpush.msra.mxu0 0.0
    %82 = vmatpush.msra.mxu0 0.0
    %83 = vmatpush.msra.mxu0 0.0
    %84 = vmatpush.msra.mxu0 0.0
    %85 = vmatpush.msra.mxu0 0.0
    %86 = vmatpush.msra.mxu0 0.0
    %87 = vmatpush.msra.mxu0 0.0
    %88 = vmatpush.msra.mxu0 0.0
    %89 = vmatpush.msra.mxu0 0.0
    %90 = vmatpush.msra.mxu0 0.0
    %91 = vmatpush.msra.mxu0 0.0
    %92 = vmatpush.msra.mxu0 0.0
    %93 = vmatpush.msra.mxu0 %v74
    %94 = vmatmul.f32.gmra.mxu0 %v62
    %v95 = vpop.f32.mrf.mxu0
    %v96 = vadd.f32 %v39, %v95
    %97 = vmatmul.f32.gmra.mxu0 %v65
    %v98 = vpop.f32.mrf.mxu0
    %v99 = vadd.f32 %v44, %v98
    %100 = vmatmul.f32.gmra.mxu0 %v68
    %v101 = vpop.f32.mrf.mxu0
    %v102 = vadd.f32 %v49, %v101
    %103 = vmatmul.f32.gmra.mxu0 %v71
    %v104 = vpop.f32.mrf.mxu0
    %v105 = vadd.f32 %v54, %v104
    %106 = vdwg.mxu0
    %107 = vmatpush.msra.mxu0 0.0
    %108 = vmatpush.msra.mxu0 0.0
    %109 = vmatpush.msra.mxu0 0.0
    %110 = vmatpush.msra.mxu0 0.0
    %111 = vmatpush.msra.mxu0 0.0
    %112 = vmatpush.msra.mxu0 0.0
    %113 = vmatpush.msra.mxu0 0.0
    %114 = vmatpush.msra.mxu0 0.0
    %115 = vmatpush.msra.mxu0 0.0
    %116 = vmatpush.msra.mxu0 0.0
    %117 = vmatpush.msra.mxu0 0.0
    %118 = vmatpush.msra.mxu0 0.0
    %119 = vmatpush.msra.mxu0 0.0
    %120 = vmatpush.msra.mxu0 0.0
    %121 = vmatpush.msra.mxu0 0.0
    %122 = vmatpush.msra.mxu0 %v76
    %123 = vmatmul.f32.gmra.mxu0 %v62
    %v124 = vpop.f32.mrf.mxu0
    %v125 = vadd.f32 %v39, %v124
    %126 = vmatmul.f32.gmra.mxu0 %v65
    %v127 = vpop.f32.mrf.mxu0
    %v128 = vadd.f32 %v44, %v127
    %129 = vmatmul.f32.gmra.mxu0 %v68
    %v130 = vpop.f32.mrf.mxu0
    %v131 = vadd.f32 %v49, %v130
    %132 = vmatmul.f32.gmra.mxu0 %v71
    %v133 = vpop.f32.mrf.mxu0
    %v134 = vadd.f32 %v54, %v133
    %135 = vdwg.mxu0
    %v136 = vmax.f32 %v96, 0.0
    %v137 = vmax.f32 %v125, 0.0
    %v138 = vmax.f32 %v99, 0.0
    %v139 = vmax.f32 %v128, 0.0
    %v140 = vmax.f32 %v102, 0.0
    %v141 = vmax.f32 %v131, 0.0
    %v142 = vmax.f32 %v105, 0.0
    %v143 = vmax.f32 %v134, 0.0
    %v144 = vld [vmem:[%s3] sm:$0xff]
    %v145 = vld [vmem:[%s3 + $0x8] sm:$0xff]
    %v146 = vld [vmem:[%s3 + $0x10] sm:$0xff]
    %v147 = vld [vmem:[%s3 + $0x18] sm:$0xff]
    %v148 = vld [vmem:[%s4] sm:$0xff]
    %v149 = vld [vmem:[%s4 + $0x8] sm:$0xff]
    %v150 = vld [vmem:[%s4 + $0x10] sm:$0xff]
    %v151 = vld [vmem:[%s4 + $0x18] sm:$0xff]
    %153 = vset.pattern.permute.xlu0 0
    %154 = vperm.xlu0 %153, %v148
    %v155 = vpop.permute.xlu0 %154
    %158 = vset.pattern.permute.xlu0 0
    %159 = vperm.xlu0 %158, %v149
    %v160 = vpop.permute.xlu0 %159
    %163 = vset.pattern.permute.xlu0 0
    %164 = vperm.xlu0 %163, %v150
    %v165 = vpop.permute.xlu0 %164
    %168 = vset.pattern.permute.xlu0 0
    %169 = vperm.xlu0 %168, %v151
    %v170 = vpop.permute.xlu0 %169
    %vm172 = vcmask 261120
    %v174 = vsel %vm172, %v144, 0
    %v177 = vsel %vm172, %v145, 0
    %v180 = vsel %vm172, %v146, 0
    %v183 = vsel %vm172, %v147, 0
    %185 = vmatpush.msra.mxu0 0.0
    %186 = vmatpush.msra.mxu0 0.0
    %187 = vmatpush.msra.mxu0 0.0
    %188 = vmatpush.msra.mxu0 0.0
    %189 = vmatpush.msra.mxu0 0.0
    %190 = vmatpush.msra.mxu0 0.0
    %191 = vmatpush.msra.mxu0 0.0
    %192 = vmatpush.msra.mxu0 0.0
    %193 = vmatpush.msra.mxu0 0.0
    %194 = vmatpush.msra.mxu0 0.0
    %195 = vmatpush.msra.mxu0 0.0
    %196 = vmatpush.msra.mxu0 0.0
    %197 = vmatpush.msra.mxu0 %v142
    %198 = vmatpush.msra.mxu0 %v140
    %199 = vmatpush.msra.mxu0 %v138
    %200 = vmatpush.msra.mxu0 %v136
    %201 = vmatmul.f32.gmra.mxu0 %v174
    %v202 = vpop.f32.mrf.mxu0
    %v203 = vadd.f32 %v155, %v202
    %204 = vmatmul.f32.gmra.mxu0 %v177
    %v205 = vpop.f32.mrf.mxu0
    %v206 = vadd.f32 %v160, %v205
    %207 = vmatmul.f32.gmra.mxu0 %v180
    %v208 = vpop.f32.mrf.mxu0
    %v209 = vadd.f32 %v165, %v208
    %210 = vmatmul.f32.gmra.mxu0 %v183
    %v211 = vpop.f32.mrf.mxu0
    %v212 = vadd.f32 %v170, %v211
    %213 = vdwg.mxu0
    %214 = vmatpush.msra.mxu0 0.0
    %215 = vmatpush.msra.mxu0 0.0
    %216 = vmatpush.msra.mxu0 0.0
    %217 = vmatpush.msra.mxu0 0.0
    %218 = vmatpush.msra.mxu0 0.0
    %219 = vmatpush.msra.mxu0 0.0
    %220 = vmatpush.msra.mxu0 0.0
    %221 = vmatpush.msra.mxu0 0.0
    %222 = vmatpush.msra.mxu0 0.0
    %223 = vmatpush.msra.mxu0 0.0
    %224 = vmatpush.msra.mxu0 0.0
    %225 = vmatpush.msra.mxu0 0.0
    %226 = vmatpush.msra.mxu0 %v143
    %227 = vmatpush.msra.mxu0 %v141
    %228 = vmatpush.msra.mxu0 %v139
    %229 = vmatpush.msra.mxu0 %v137
    %230 = vmatmul.f32.gmra.mxu0 %v174
    %v231 = vpop.f32.mrf.mxu0
    %v232 = vadd.f32 %v155, %v231
    %233 = vmatmul.f32.gmra.mxu0 %v177
    %v234 = vpop.f32.mrf.mxu0
    %v235 = vadd.f32 %v160, %v234
    %236 = vmatmul.f32.gmra.mxu0 %v180
    %v237 = vpop.f32.mrf.mxu0
    %v238 = vadd.f32 %v165, %v237
    %239 = vmatmul.f32.gmra.mxu0 %v183
    %v240 = vpop.f32.mrf.mxu0
    %v241 = vadd.f32 %v170, %v240
    %242 = vdwg.mxu0
    %v243 = vmax.f32 %v203, 0.0
    %v244 = vmax.f32 %v232, 0.0
    %v245 = vmax.f32 %v206, 0.0
    %v246 = vmax.f32 %v235, 0.0
    %v247 = vmax.f32 %v209, 0.0
    %v248 = vmax.f32 %v238, 0.0
    %v249 = vmax.f32 %v212, 0.0
    %v250 = vmax.f32 %v241, 0.0
    %v251 = vld [vmem:[%s5] sm:$0x7]
    %v252 = vld [vmem:[%s6] sm:$0x7]
    %254 = vset.pattern.permute.xlu0 0
    %255 = vperm.xlu0 %254, %v252
    %v256 = vpop.permute.xlu0 %255
    %v259 = vsel %vm172, %v251, 0
    %261 = vmatpush.msra.mxu0 0.0
    %262 = vmatpush.msra.mxu0 0.0
    %263 = vmatpush.msra.mxu0 0.0
    %264 = vmatpush.msra.mxu0 0.0
    %265 = vmatpush.msra.mxu0 0.0
    %266 = vmatpush.msra.mxu0 0.0
    %267 = vmatpush.msra.mxu0 0.0
    %268 = vmatpush.msra.mxu0 0.0
    %269 = vmatpush.msra.mxu0 0.0
    %270 = vmatpush.msra.mxu0 0.0
    %271 = vmatpush.msra.mxu0 0.0
    %272 = vmatpush.msra.mxu0 0.0
    %273 = vmatpush.msra.mxu0 %v249
    %274 = vmatpush.msra.mxu0 %v247
    %275 = vmatpush.msra.mxu0 %v245
    %276 = vmatpush.msra.mxu0 %v243
    %277 = vmatmul.f32.gmra.mxu0 %v259
    %v278 = vpop.f32.mrf.mxu0
    %v279 = vadd.f32 %v256, %v278
    %280 = vdwg.mxu0
    %281 = vmatpush.msra.mxu0 0.0
    %282 = vmatpush.msra.mxu0 0.0
    %283 = vmatpush.msra.mxu0 0.0
    %284 = vmatpush.msra.mxu0 0.0
    %285 = vmatpush.msra.mxu0 0.0
    %286 = vmatpush.msra.mxu0 0.0
    %287 = vmatpush.msra.mxu0 0.0
    %288 = vmatpush.msra.mxu0 0.0
    %289 = vmatpush.msra.mxu0 0.0
    %290 = vmatpush.msra.mxu0 0.0
    %291 = vmatpush.msra.mxu0 0.0
    %292 = vmatpush.msra.mxu0 0.0
    %293 = vmatpush.msra.mxu0 %v250
    %294 = vmatpush.msra.mxu0 %v248
    %295 = vmatpush.msra.mxu0 %v246
    %296 = vmatpush.msra.mxu0 %v244
    %297 = vmatmul.f32.gmra.mxu0 %v259
    %v298 = vpop.f32.mrf.mxu0
    %v299 = vadd.f32 %v256, %v298
    %300 = vdwg.mxu0
    %v303 = vrot.slane %v299, 4
    %v304 = vsel %vm73, %v279, %v303
    %vm306 = vcmask 1042432
    %vm307 = vcmask 587780
    %vm308 = vmor %vm307, %vm306
    %309 = vst.msk [vmem:[#allocation2] sm:$0x77] %vm308, %v304
    // Predicated region
    $region30: #{tpu_custom_call.1} parent=1 // pred_check
      _
    $region31: #{tpu_custom_call.1} parent=1 // pred_check_branch
      %311 = sbr.rel (0) target = $region33
    $region32: #{tpu_custom_call.1} parent=1 // pred_region
      %313 = vsyncadd [#allocation3], 0
      %s315 = sshll.u32 [#allocation2], 4
      %s316 = int_to_ptr.vmem [resolvable:$true] %s315
      %s317 = sshll.u32 %s7, 4
      %s318 = int_to_ptr.hbm [resolvable:$true] %s317
      %320 = dma.vmem_to_hbm [thread:$0]  %s316, 128, %s318, [#allocation3]
    $region33: #{tpu_custom_call.1} parent=1 // pred_fallthru
      _
    // Predicated region
    $region34: #{tpu_custom_call.1} parent=1 // pred_check
      _
    $region35: #{tpu_custom_call.1} parent=1 // pred_check_branch
      %322 = sbr.rel (0) target = $region37
    $region36: #{tpu_custom_call.1} parent=1 // pred_region
      %324 = dma.done [#allocation3], 128
    $region37: #{tpu_custom_call.1} parent=1 // pred_fallthru
      _
    %325 = vsyncpa [#allocation3], 1

</llo_original>
